<compile_context>
chip_gen: v7x
topology: tpu7x:2x2x1
jax: 0.10.0
libtpu: 0.0.40
codegen_flags: <defaults>
</compile_context>

<pallas_src>
import jax
import jax.numpy as jnp
from jax import lax
from jax.experimental import pallas as pl
from jax.experimental.pallas import tpu as pltpu


# ---------------------------------------------------------------------------
# Fused kernel: per (patch-tile, batch) block
#   out[b, :, tile] = W_ek @ patches[b, :, tile] + (bias + pos_conv)[:, tile]
# ---------------------------------------------------------------------------
def _fused_patch_embed_kernel(p_ref, w_ref, pos_ref, o_ref):
    # p_ref:   (1, K, TNp)  patches for this (tile, batch), K-major (canonical RHS)
    # w_ref:   (E, K)       conv weight, resident across the whole grid
    # pos_ref: (E, TNp)     positional encodings (+ folded bias) in conv layout;
    #                       block index constant across the inner batch sweep -> one HBM read
    # o_ref:   (1, E, TNp)  output tile, conv (channel-major) layout, f32
    y = jnp.dot(w_ref[...], p_ref[0], preferred_element_type=jnp.float32)  # (E, TNp)
    o_ref[0] = y + pos_ref[...]


def _pick_patch_tile(num_patches: int, cap: int = 512) -> int:
    """Largest multiple of 128 that divides num_patches and is <= cap.

    Falls back to the full extent when num_patches is not a multiple of 128 (the Mosaic
    lane constraint then requires the full dim).  Per-generation caps: keep <= 512 on
    v5e (16 MiB default scoped VMEM) and v7x (64 MiB total VMEM); v6e can go to 1024.
    """
    if num_patches % 128 != 0:
        return num_patches
    best = 128
    t = 256
    while t <= min(cap, num_patches):
        if num_patches % t == 0:
            best = t
        t += 128
    return best


def fused_patch_embed(patches_km, w_ek, pos_bias_conv, *, tile_np):
    B, K, Np = patches_km.shape
    E = w_ek.shape[0]
    assert Np % tile_np == 0, (Np, tile_np)
    n_tiles = Np // tile_np

    flops = 2 * B * E * K * Np
    bytes_accessed = (
        patches_km.size * patches_km.dtype.itemsize
        + w_ek.size * w_ek.dtype.itemsize
        + pos_bias_conv.size * 4
        + B * E * Np * 4
    )

    # TODO(synk): on v7x, when n_tiles == 1 and B == 1 add a parallel grid axis over E
    # (block-slicing w/pos/out along E) to guarantee >=2-way work for the two TensorCores.
    return pl.pallas_call(
        _fused_patch_embed_kernel,
        out_shape=jax.ShapeDtypeStruct((B, E, Np), jnp.float32),
        grid=(n_tiles, B),  # tile outer, batch inner -> pos block re-used across batches
        in_specs=[
            pl.BlockSpec((1, K, tile_np), lambda t, b: (b, 0, t)),  # lane-dense patch tile
            pl.BlockSpec((E, K), lambda t, b: (0, 0)),              # resident weight
            pl.BlockSpec((E, tile_np), lambda t, b: (0, t)),        # pos(+bias), 1 HBM read
        ],
        out_specs=pl.BlockSpec((1, E, tile_np), lambda t, b: (b, 0, t)),
        compiler_params=pltpu.CompilerParams(
            dimension_semantics=("parallel", "parallel")),
        cost_estimate=pl.CostEstimate(
            flops=flops, transcendentals=0, bytes_accessed=bytes_accessed),
    )(patches_km, w_ek, pos_bias_conv)


# ---------------------------------------------------------------------------
# Module-level forward (glue + kernel)
# ---------------------------------------------------------------------------
def make_positional_encodings(embedding_size, max_seq_len=1000):
    pos_indices = jnp.arange(max_seq_len, dtype=jnp.float32)[:, None]
    dim_indices = jnp.arange(embedding_size // 2, dtype=jnp.float32)[None, :]
    exponents = (2.0 * dim_indices) / embedding_size
    trig_args = pos_indices / (10000.0 ** exponents)
    sin_terms = jnp.sin(trig_args)
    cos_terms = jnp.cos(trig_args)
    pe = jnp.zeros((max_seq_len, embedding_size), dtype=jnp.float32)
    pe = pe.at[:, 0::2].set(sin_terms)
    pe = pe.at[:, 1::2].set(cos_terms)
    return pe


def patch_embedding_forward(x, weight, bias, cls_token, pos_enc, patch_size,
                            *, compute_dtype=jnp.bfloat16, tile_cap=512):
    # x: (B, C, H, W); weight: (E, C, P, P); bias: (E,); cls_token: (1, 1, E)
    B, C, H, W = x.shape
    E = weight.shape[0]
    P = patch_size
    Hp, Wp = H // P, W // P
    Np = Hp * Wp
    K = C * P * P
    S = Np + 1

    # im2col, K-major (B, K, Np); K ordered (C, ph, pw) to match the OIHW weight reshape.
    # TODO(synk): fold this gather into the kernel DMA (Hp-row-strip BlockSpec or NHWC
    # pre-layout) to drop this extra HBM pass over x.
    patches_km = (
        x.reshape(B, C, Hp, P, Wp, P)
        .transpose(0, 1, 3, 5, 2, 4)            # (B, C, ph, pw, Hp, Wp)
        .reshape(B, K, Np)
        .astype(compute_dtype)
    )
    w_ek = weight.reshape(E, K).astype(compute_dtype)

    # Positions for the patch rows, raw-reinterpreted into conv (E, Np) layout so the add
    # happens in the matmul epilogue *before* the free .view reshape; conv bias folded in.
    pos_conv = pos_enc[1:S].astype(jnp.float32).reshape(E, Np)       # raw view, not transpose
    pos_bias_conv = pos_conv + bias.astype(jnp.float32)[:, None]

    tile_np = _pick_patch_tile(Np, cap=tile_cap)
    out_conv = fused_patch_embed(patches_km, w_ek, pos_bias_conv, tile_np=tile_np)  # (B, E, Np)

    # PyTorch: conv output (B, E, Hp, Wp) contiguous, then .view(B, -1, E) = raw reshape.
    patch_tokens = out_conv.reshape(B, Np, E)                        # free row-major view

    cls_row = cls_token.reshape(1, E).astype(jnp.float32) + pos_enc[0:1].astype(jnp.float32)
    cls_tokens = jnp.broadcast_to(cls_row[None, :, :], (B, 1, E))
    # TODO(synk): writing the kernel output straight into the final (B,S,E) buffer needs an
    # in-kernel (E,Np)->flat relayout or Element-offset out blocks; left as one XLA concat.
    return jnp.concatenate([cls_tokens, patch_tokens], axis=1)


# ---------------------------------------------------------------------------
# Pure-JAX reference for verification (mirrors the PyTorch module exactly)
# ---------------------------------------------------------------------------
def reference_forward(x, weight, bias, cls_token, pos_enc, patch_size):
    B = x.shape[0]
    E = weight.shape[0]
    conv = lax.conv_general_dilated(
        x, weight, window_strides=(patch_size, patch_size), padding="VALID",
        dimension_numbers=("NCHW", "OIHW", "NCHW"),
    )
    conv = conv + bias[None, :, None, None]
    x_view = conv.reshape(B, -1, E)
    cls = jnp.broadcast_to(cls_token, (B, 1, E))
    seq = jnp.concatenate([cls, x_view], axis=1)
    S = seq.shape[1]
    return seq + pos_enc[:S][None]


if __name__ == "__main__":
    def run_case(B, C, H, W, P, E, compute_dtype, rtol, atol, tile_cap=512):
        key = jax.random.PRNGKey(0)
        k_x, k_w, k_b, k_cls = jax.random.split(key, 4)
        x = jax.random.normal(k_x, (B, C, H, W), dtype=jnp.float32)
        weight = jax.random.normal(k_w, (E, C, P, P), dtype=jnp.float32) * 0.1
        bias = jax.random.normal(k_b, (E,), dtype=jnp.float32) * 0.1
        cls_token = jax.random.normal(k_cls, (1, 1, E), dtype=jnp.float32)
        pos_enc = make_positional_encodings(E, max_seq_len=1000)

        out = patch_embedding_forward(x, weight, bias, cls_token, pos_enc, P,
                                      compute_dtype=compute_dtype, tile_cap=tile_cap)
        out = jax.block_until_ready(out)

        ref = reference_forward(x, weight, bias, cls_token, pos_enc, P)
        S = (H // P) * (W // P) + 1
        assert out.shape == (B, S, E), out.shape
        assert jnp.allclose(out, ref, rtol=rtol, atol=atol), (
            f"mismatch vs reference: max abs err {jnp.max(jnp.abs(out - ref))}")

    # Module defaults (in_channels=3, patch_size=2, embedding_size=64, img_size=8),
    # f32 path for a tight semantics check.
    run_case(B=2, C=3, H=8, W=8, P=2, E=64,
             compute_dtype=jnp.float32, rtol=1e-3, atol=1e-3)
    # Same shape on the bf16 fast path (f32 accumulate + f32 epilogue).
    run_case(B=2, C=3, H=8, W=8, P=2, E=64,
             compute_dtype=jnp.bfloat16, rtol=3e-2, atol=3e-2)
    # Np=256 -> one lane-dense 256-wide patch tile.
    run_case(B=2, C=3, H=32, W=32, P=2, E=64,
             compute_dtype=jnp.bfloat16, rtol=3e-2, atol=3e-2)
    # Np=640 (multiple of 128 but not of 512) -> exercises the fixed divisor-aware tile
    # picker: tile_np=128, 5 patch tiles, batch-inner grid sweep.
    run_case(B=2, C=3, H=32, W=80, P=2, E=64,
             compute_dtype=jnp.bfloat16, rtol=3e-2, atol=3e-2)

    print("KERNEL_OK")
</pallas_src>

<mosaic_0001>
module attributes {stable_mosaic.version = 11 : i64} {
  func.func @_fused_patch_embed_kernel(%arg0: i32, %arg1: i32, %arg2: memref<1x12x16xf32, #tpu.memory_space<vmem>>, %arg3: memref<64x12xf32, #tpu.memory_space<vmem>>, %arg4: memref<64x16xf32, #tpu.memory_space<vmem>>, %arg5: memref<1x64x16xf32, #tpu.memory_space<vmem>>) attributes {dimension_semantics = [#tpu.dimension_semantics<parallel>, #tpu.dimension_semantics<parallel>], iteration_bounds = array<i64: 1, 2>, scalar_prefetch = 0 : i64, scratch_operands = 0 : i64, tpu.core_type = #tpu.core_type<tc>, window_params = [{transform_indices = @transform_0, window_bounds = array<i64: 1, 12, 16>}, {pipeline_mode = #tpu.pipeline_mode<synchronous>, transform_indices = @transform_1, window_bounds = array<i64: 64, 12>}, {transform_indices = @transform_2, window_bounds = array<i64: 64, 16>}, {transform_indices = @transform_3, window_bounds = array<i64: 1, 64, 16>}]} {
    %c0 = arith.constant 0 : index
    %c0_0 = arith.constant 0 : index
    %0 = vector.load %arg3[%c0, %c0_0] : memref<64x12xf32, #tpu.memory_space<vmem>>, vector<64x12xf32>
    %c0_1 = arith.constant 0 : index
    %c0_2 = arith.constant 0 : index
    %c0_3 = arith.constant 0 : index
    %1 = vector.load %arg2[%c0_1, %c0_2, %c0_3] : memref<1x12x16xf32, #tpu.memory_space<vmem>>, vector<1x12x16xf32>
    %2 = vector.shape_cast %1 : vector<1x12x16xf32> to vector<12x16xf32>
    %cst = arith.constant dense<0.000000e+00> : vector<64x16xf32>
    %3 = tpu.matmul %0, %2, %cst {dimension_numbers = #tpu.dot_dimension_numbers<[1], [0], [0], [1], [0, 0, 1, 1], [], []>} : vector<64x12xf32>, vector<12x16xf32>, vector<64x16xf32> -> vector<64x16xf32>
    %c0_4 = arith.constant 0 : index
    %c0_5 = arith.constant 0 : index
    %4 = vector.load %arg4[%c0_4, %c0_5] : memref<64x16xf32, #tpu.memory_space<vmem>>, vector<64x16xf32>
    %5 = arith.addf %3, %4 : vector<64x16xf32>
    %c0_6 = arith.constant 0 : index
    %c0_7 = arith.constant 0 : index
    %c0_8 = arith.constant 0 : index
    %6 = vector.load %arg5[%c0_6, %c0_7, %c0_8] : memref<1x64x16xf32, #tpu.memory_space<vmem>>, vector<1x64x16xf32>
    %7 = vector.shape_cast %6 : vector<1x64x16xf32> to vector<64x16xf32>
    %8 = vector.shape_cast %5 : vector<64x16xf32> to vector<1x64x16xf32>
    tpu.vector_store %arg5[%c0_6, %c0_7, %c0_8], %8 {strides = array<i32>} : memref<1x64x16xf32, #tpu.memory_space<vmem>>, vector<1x64x16xf32>,
    return
  }
  func.func @transform_0(%arg0: i32, %arg1: i32) -> (i32, i32, i32) {
    %c0_i32 = arith.constant 0 : i32
    %c0_i32_0 = arith.constant 0 : i32
    return %arg1, %c0_i32, %arg0 : i32, i32, i32
  }
  func.func @transform_1(%arg0: i32, %arg1: i32) -> (i32, i32) {
    %c0_i32 = arith.constant 0 : i32
    %c0_i32_0 = arith.constant 0 : i32
    %c0_i32_1 = arith.constant 0 : i32
    return %c0_i32, %c0_i32_0 : i32, i32
  }
  func.func @transform_2(%arg0: i32, %arg1: i32) -> (i32, i32) {
    %c0_i32 = arith.constant 0 : i32
    %c0_i32_0 = arith.constant 0 : i32
    return %c0_i32, %arg0 : i32, i32
  }
  func.func @transform_3(%arg0: i32, %arg1: i32) -> (i32, i32, i32) {
    %c0_i32 = arith.constant 0 : i32
    %c0_i32_0 = arith.constant 0 : i32
    return %arg1, %c0_i32, %arg0 : i32, i32, i32
  }
}

</mosaic_0001>

<llo_original>
// kernel: tpu_custom_call.1
$region0: #{tpu_custom_call.1}
  #allocation0 [shape = 'u32[]', space=smem, size = 0x4, offset = 0x4, fixed_abs, tag = 'smem constant byte address 0x4 - core index']
  #allocation1 [shape = 'u32[144,128]{1,0:T(1,128)}', space=vmem, size = 0x12000, scoped, tag = 'internal scratch']
  %s0 = inlined_call_operand.vmem [shape: f32[2,12,16], index: 0, kind: input, shape index: {}]
  %s1 = inlined_call_operand.vmem [shape: f32[64,12], index: 1, kind: input, shape index: {}]
  %s2 = inlined_call_operand.vmem [shape: f32[64,16], index: 2, kind: input, shape index: {}]
  %s3 = inlined_call_operand.vmem [shape: f32[2,64,16], index: 3, kind: output, shape index: {}]
  %s4 = sld [smem:[#allocation0]]
  $region45: #{tpu_custom_call.1} parent=0
    _
  %s6 = ssub.s32 1, %s4
  %s7 = scalar_select 0, %s6, %s4
  loop: start=0, step=1, limit=4
  $region2: #{tpu_custom_call.1} parent=0 // loop_pre_header
    _
  $region3: #{tpu_custom_call.1} parent=0 // loop_header
    %s9 = sphi 0, %s13
    %p10 = scmp.ge.s32.totalorder %s9, 4
    %s16 = sphi 0, %s28
    %s17 = sphi 0, %s24
    %s18 = sphi 0, %s16
    %s19 = sphi 0, %s17
    %s20 = sphi 0, %s18
    %s21 = sphi 0, %s19
    %s33 = sphi 0, %s35
    %s36 = sphi 0, %s33
    %s37 = sphi 0, %s36
    %s53 = sphi 0, %s37
    %s57 = sphi 0, %s57
    %s59 = sphi 0, %s57
    %s60 = sphi 0, %s59
    %s74 = sphi 0, %s60
    %s80 = sphi 0, %s82
    %s83 = sphi 0, %s80
    %s84 = sphi 0, %s83
    %s100 = sphi 0, %s84
    %s108 = sphi 0, %s110
    %s111 = sphi 0, %s108
    %s112 = sphi 0, %s111
    %s128 = sphi 0, %s112
  $region4: #{tpu_custom_call.1} parent=0 // loop_header_branch
    %12 = sbr.rel (%p10) target = $region8
  $region5: #{tpu_custom_call.1} parent=0 // loop_body
    %s14 = ssub.s32 %s9, 1
    %s15 = ssub.s32 %s9, 2
    %s22 = sadd.s32 1, %s17
    %p23 = scmp.ge.s32.totalorder %s22, 2
    %s24 = scalar_select %p23, 0, %s22
    %s25 = sadd.s32 1, %s16
    %s26 = scalar_select %p23, %s25, %s16
    %p27 = scmp.ge.s32.totalorder %s26, 1
    %s28 = scalar_select %p27, 0, %s26
    %s29 = ssub.s32 %s17, %s24
    %s30 = ssub.s32 %s16, %s28
    %s31 = sor.u32 %s29, %s30
    %p32 = scmp.eq.s32.totalorder %s31, 0
    %s34 = sadd.s32 %s33, 1
    %s35 = scalar_select %p32, %s33, %s34
    %p38 = pneg %p32
    %p39 = scmp.eq.s32.totalorder %s9, 1
    %p40 = por %p38, %p39
    %p41 = scmp.ne.s32.totalorder %s33, %s36
    %p42 = scmp.eq.s32.totalorder %s9, 0
    %p43 = por %p41, %p42
    %p44 = scmp.ne.s32.totalorder %s33, %s36
    %p45 = scmp.eq.s32.totalorder %s14, 1
    %p46 = por %p44, %p45
    %p47 = scmp.ne.s32.totalorder %s36, %s37
    %p48 = scmp.eq.s32.totalorder %s14, 0
    %p49 = por %p47, %p48
    %p50 = scmp.ne.s32.totalorder %s36, %s37
    %p51 = scmp.eq.s32.totalorder %s15, 1
    %p52 = por %p50, %p51
    %p54 = scmp.ne.s32.totalorder %s37, %s53
    %p55 = scmp.eq.s32.totalorder %s15, 0
    %p56 = por %p54, %p55
    %s58 = sadd.s32 %s57, 1
    %p61 = scmp.eq.s32.totalorder %s9, 1
    %p62 = scmp.ne.s32.totalorder %s57, %s59
    %p63 = scmp.eq.s32.totalorder %s9, 0
    %p64 = por %p62, %p63
    %p65 = scmp.ne.s32.totalorder %s57, %s59
    %p66 = scmp.eq.s32.totalorder %s14, 1
    %p67 = por %p65, %p66
    %p68 = scmp.ne.s32.totalorder %s59, %s60
    %p69 = scmp.eq.s32.totalorder %s14, 0
    %p70 = por %p68, %p69
    %p71 = scmp.ne.s32.totalorder %s59, %s60
    %p72 = scmp.eq.s32.totalorder %s15, 1
    %p73 = por %p71, %p72
    %p75 = scmp.ne.s32.totalorder %s60, %s74
    %p76 = scmp.eq.s32.totalorder %s15, 0
    %p77 = por %p75, %p76
    %s78 = ssub.s32 %s16, %s28
    %p79 = scmp.eq.s32.totalorder %s78, 0
    %s81 = sadd.s32 %s80, 1
    %s82 = scalar_select %p79, %s80, %s81
    %p85 = pneg %p79
    %p86 = scmp.eq.s32.totalorder %s9, 1
    %p87 = por %p85, %p86
    %p88 = scmp.ne.s32.totalorder %s80, %s83
    %p89 = scmp.eq.s32.totalorder %s9, 0
    %p90 = por %p88, %p89
    %p91 = scmp.ne.s32.totalorder %s80, %s83
    %p92 = scmp.eq.s32.totalorder %s14, 1
    %p93 = por %p91, %p92
    %p94 = scmp.ne.s32.totalorder %s83, %s84
    %p95 = scmp.eq.s32.totalorder %s14, 0
    %p96 = por %p94, %p95
    %p97 = scmp.ne.s32.totalorder %s83, %s84
    %p98 = scmp.eq.s32.totalorder %s15, 1
    %p99 = por %p97, %p98
    %p101 = scmp.ne.s32.totalorder %s84, %s100
    %p102 = scmp.eq.s32.totalorder %s15, 0
    %p103 = por %p101, %p102
    %s104 = ssub.s32 %s17, %s24
    %s105 = ssub.s32 %s16, %s28
    %s106 = sor.u32 %s104, %s105
    %p107 = scmp.eq.s32.totalorder %s106, 0
    %s109 = sadd.s32 %s108, 1
    %s110 = scalar_select %p107, %s108, %s109
    %p113 = pneg %p107
    %p114 = scmp.eq.s32.totalorder %s9, 1
    %p115 = por %p113, %p114
    %p116 = scmp.ne.s32.totalorder %s108, %s111
    %p117 = scmp.eq.s32.totalorder %s9, 0
    %p118 = por %p116, %p117
    %p119 = scmp.ne.s32.totalorder %s108, %s111
    %p120 = scmp.eq.s32.totalorder %s14, 1
    %p121 = por %p119, %p120
    %p122 = scmp.ne.s32.totalorder %s111, %s112
    %p123 = scmp.eq.s32.totalorder %s14, 0
    %p124 = por %p122, %p123
    %p125 = scmp.ne.s32.totalorder %s111, %s112
    %p126 = scmp.eq.s32.totalorder %s15, 1
    %p127 = por %p125, %p126
    %p129 = scmp.ne.s32.totalorder %s112, %s128
    %p130 = scmp.eq.s32.totalorder %s15, 0
    %p131 = por %p129, %p130
    %p132 = scmp.le.s32.totalorder 1, %s9
    %p133 = scmp.lt.s32.totalorder %s9, 3
    %p134 = pnand %p132, %p133
    %p135 = pneg %p134
    // Predicated region
    $region9: #{tpu_custom_call.1} parent=5 // pred_check
      _
    $region10: #{tpu_custom_call.1} parent=5 // pred_check_branch
      %137 = sbr.rel (%p134) target = $region12
    $region11: #{tpu_custom_call.1} parent=5 // pred_region
      %s138 = ssub.s32 %s9, 1
      // Predicated region
      $region13: #{tpu_custom_call.1} parent=11 // pred_check
        %p139 = pneg %p70
      $region14: #{tpu_custom_call.1} parent=11 // pred_check_branch
        %141 = sbr.rel (%p139) target = $region16
      $region15: #{tpu_custom_call.1} parent=11 // pred_region
        _
      $region16: #{tpu_custom_call.1} parent=11 // pred_fallthru
        _
      // Predicated region
      $region17: #{tpu_custom_call.1} parent=11 // pred_check
        %p142 = pneg %p96
      $region18: #{tpu_custom_call.1} parent=11 // pred_check_branch
        %144 = sbr.rel (%p142) target = $region20
      $region19: #{tpu_custom_call.1} parent=11 // pred_region
        %p145 = scmp.lt.s32.totalorder %s18, 0
        %s146 = scalar_select %p145, %s18, 0
        %s147 = smul.addr %s146, 8
        %s148 = scalar_lea.vmem %s2, %s147
      $region20: #{tpu_custom_call.1} parent=11 // pred_fallthru
        _
    $region12: #{tpu_custom_call.1} parent=5 // pred_fallthru
      _
    %p149 = scmp.lt.s32.totalorder %s9, 2
    // Predicated region
    $region21: #{tpu_custom_call.1} parent=5 // pred_check
      %p150 = pneg %p149
    $region22: #{tpu_custom_call.1} parent=5 // pred_check_branch
      %152 = sbr.rel (%p150) target = $region24
    $region23: #{tpu_custom_call.1} parent=5 // pred_region
      // Predicated region
      $region25: #{tpu_custom_call.1} parent=23 // pred_check
        %p153 = pneg %p43
      $region26: #{tpu_custom_call.1} parent=23 // pred_check_branch
        %155 = sbr.rel (%p153) target = $region28
      $region27: #{tpu_custom_call.1} parent=23 // pred_region
        %p156 = scmp.lt.s32.totalorder %s17, 1
        %s157 = scalar_select %p156, %s17, 1
        %p158 = scmp.lt.s32.totalorder %s16, 0
        %s159 = scalar_select %p158, %s16, 0
        %s160 = smul.addr %s157, 2
        %s161 = sadd.s32 %s159, %s160
        %s162 = smul.addr %s161, 8
        %s163 = scalar_lea.vmem %s0, %s162
      $region28: #{tpu_custom_call.1} parent=23 // pred_fallthru
        _
    $region24: #{tpu_custom_call.1} parent=5 // pred_fallthru
      _
    %p164 = scmp.le.s32.totalorder 1, %s9
    %p165 = scmp.lt.s32.totalorder %s9, 3
    %p166 = pnand %p164, %p165
    %p167 = pneg %p166
    // Predicated region
    $region29: #{tpu_custom_call.1} parent=5 // pred_check
      _
    $region30: #{tpu_custom_call.1} parent=5 // pred_check_branch
      %169 = sbr.rel (%p166) target = $region32
    $region31: #{tpu_custom_call.1} parent=5 // pred_region
      %s170 = ssub.s32 %s9, 1
      %p171 = scmp.lt.s32.totalorder %s19, 1
      %s172 = scalar_select %p171, %s19, 1
      %p173 = scmp.lt.s32.totalorder %s18, 0
      %s174 = scalar_select %p173, %s18, 0
      %s175 = smul.addr %s172, 2
      %s176 = sadd.s32 %s174, %s175
      %s177 = smul.addr %s176, 8
      %s178 = scalar_lea.vmem %s0, %s177
      %p179 = pneg %p49
      %p180 = pneg %p46
      %p181 = pneg %p70
      %p182 = pneg %p67
      %p183 = scmp.lt.s32.totalorder %s18, 0
      %s184 = scalar_select %p183, %s18, 0
      %s185 = smul.addr %s184, 8
      %s186 = scalar_lea.vmem %s2, %s185
      %p187 = pneg %p96
      %p188 = pneg %p93
      %p189 = pneg %p124
      %p190 = pneg %p121
      %p191 = scmp.lt.s32.totalorder %s19, 1
      %s192 = scalar_select %p191, %s19, 1
      %p193 = scmp.lt.s32.totalorder %s18, 0
      %s194 = scalar_select %p193, %s18, 0
      %s195 = smul.addr %s192, 8
      %s196 = sadd.s32 %s194, %s195
      %s197 = smul.addr %s196, 8
      %s198 = scalar_lea.vmem %s3, %s197
      %p199 = scmp.lt.s32.totalorder %s19, 1
      %s200 = scalar_select %p199, %s19, 1
      %p201 = scmp.lt.s32.totalorder %s18, 0
      %s202 = scalar_select %p201, %s18, 0
      %s203 = smul.addr %s200, 2
      %s204 = sadd.s32 %s202, %s203
      %s205 = smul.addr %s204, 8
      %s206 = scalar_lea.vmem %s0, %s205
      %p207 = scmp.lt.s32.totalorder %s18, 0
      %s208 = scalar_select %p207, %s18, 0
      %s209 = smul.addr %s208, 8
      %s210 = scalar_lea.vmem %s2, %s209
      %p211 = scmp.lt.s32.totalorder %s19, 1
      %s212 = scalar_select %p211, %s19, 1
      %p213 = scmp.lt.s32.totalorder %s18, 0
      %s214 = scalar_select %p213, %s18, 0
      %s215 = smul.addr %s212, 8
      %s216 = sadd.s32 %s214, %s215
      %s217 = smul.addr %s216, 8
      %s218 = scalar_lea.vmem %s3, %s217
      %v219 = vld [vmem:[%s1] sm:$0xff]
      %v220 = vld [vmem:[%s1 + $0x8] sm:$0xff]
      %v221 = vld [vmem:[%s1 + $0x10] sm:$0xff]
      %v222 = vld [vmem:[%s1 + $0x18] sm:$0xff]
      %v223 = vld [vmem:[%s1 + $0x20] sm:$0xff]
      %v224 = vld [vmem:[%s1 + $0x28] sm:$0xff]
      %v225 = vld [vmem:[%s1 + $0x30] sm:$0xff]
      %v226 = vld [vmem:[%s1 + $0x38] sm:$0xff]
      %v227 = vld [vmem:[%s206] sm:$0xff]
      %v228 = vld [vmem:[%s206 + $0x8] sm:$0xf]
      %v229 = vld [vmem:[%s210] sm:$0xff]
      %v230 = vld [vmem:[%s210 + $0x8] sm:$0xff]
      %v231 = vld [vmem:[%s210 + $0x10] sm:$0xff]
      %v232 = vld [vmem:[%s210 + $0x18] sm:$0xff]
      %v233 = vld [vmem:[%s210 + $0x20] sm:$0xff]
      %v234 = vld [vmem:[%s210 + $0x28] sm:$0xff]
      %v235 = vld [vmem:[%s210 + $0x30] sm:$0xff]
      %v236 = vld [vmem:[%s210 + $0x38] sm:$0xff]
      %vm237 = vcmask 97280
      %v239 = vsel %vm237, %v219, 0
      %v242 = vsel %vm237, %v220, 0
      %v245 = vsel %vm237, %v221, 0
      %v248 = vsel %vm237, %v222, 0
      %v251 = vsel %vm237, %v223, 0
      %v254 = vsel %vm237, %v224, 0
      %v257 = vsel %vm237, %v225, 0
      %v260 = vsel %vm237, %v226, 0
      %vm262 = vcmask 1043456
      %v264 = vsel %vm262, %v228, 0
      %266 = vmatprep.subr.mxu0 0.0
      %267 = vmatpush1.msra.mxu0 %v227
      %268 = vmatprep.subr.mxu0 0.0
      %269 = vmatpush1.msra.mxu0 %v264
      %270 = vmatprep.subr.mxu0 0.0
      %271 = vmatpush1.msra.mxu0 0.0
      %272 = vmatprep.subr.mxu0 0.0
      %273 = vmatpush1.msra.mxu0 0.0
      %274 = vmatprep.subr.mxu0 0.0
      %275 = vmatpush1.msra.mxu0 0.0
      %276 = vmatprep.subr.mxu0 0.0
      %277 = vmatpush1.msra.mxu0 0.0
      %278 = vmatprep.subr.mxu0 0.0
      %279 = vmatpush1.msra.mxu0 0.0
      %280 = vmatprep.subr.mxu0 0.0
      %281 = vmatpush1.msra.mxu0 0.0
      %282 = vmatprep.subr.mxu0 0.0
      %283 = vmatpush1.msra.mxu0 0.0
      %284 = vmatprep.subr.mxu0 0.0
      %285 = vmatpush1.msra.mxu0 0.0
      %286 = vmatprep.subr.mxu0 0.0
      %287 = vmatpush1.msra.mxu0 0.0
      %288 = vmatprep.subr.mxu0 0.0
      %289 = vmatpush1.msra.mxu0 0.0
      %290 = vmatprep.subr.mxu0 0.0
      %291 = vmatpush1.msra.mxu0 0.0
      %292 = vmatprep.subr.mxu0 0.0
      %293 = vmatpush1.msra.mxu0 0.0
      %294 = vmatprep.subr.mxu0 0.0
      %295 = vmatpush1.msra.mxu0 0.0
      %296 = vmatprep.subr.mxu0 0.0
      %297 = vmatpush1.msra.mxu0 0.0
      %298 = vmatprep.subr.mxu0 0.0
      %299 = vmatpush1.msra.mxu0 0.0
      %300 = vmatprep.subr.mxu0 0.0
      %301 = vmatpush1.msra.mxu0 0.0
      %302 = vmatprep.subr.mxu0 0.0
      %303 = vmatpush1.msra.mxu0 0.0
      %304 = vmatprep.subr.mxu0 0.0
      %305 = vmatpush1.msra.mxu0 0.0
      %306 = vmatprep.subr.mxu0 0.0
      %307 = vmatpush1.msra.mxu0 0.0
      %308 = vmatprep.subr.mxu0 0.0
      %309 = vmatpush1.msra.mxu0 0.0
      %310 = vmatprep.subr.mxu0 0.0
      %311 = vmatpush1.msra.mxu0 0.0
      %312 = vmatprep.subr.mxu0 0.0
      %313 = vmatpush1.msra.mxu0 0.0
      %314 = vmatprep.subr.mxu0 0.0
      %315 = vmatpush1.msra.mxu0 0.0
      %316 = vmatprep.subr.mxu0 0.0
      %317 = vmatpush1.msra.mxu0 0.0
      %318 = vmatprep.subr.mxu0 0.0
      %319 = vmatpush1.msra.mxu0 0.0
      %320 = vmatprep.subr.mxu0 0.0
      %321 = vmatpush1.msra.mxu0 0.0
      %322 = vmatprep.subr.mxu0 0.0
      %323 = vmatpush1.msra.mxu0 0.0
      %324 = vmatprep.subr.mxu0 0.0
      %325 = vmatpush1.msra.mxu0 0.0
      %326 = vmatprep.subr.mxu0 0.0
      %327 = vmatpush1.msra.mxu0 0.0
      %328 = vmatprep.subr.mxu0 0.0
      %329 = vmatpush1.msra.mxu0 0.0
      %330 = vmatprep.mubr.f32.mxu0 0.0
      %331 = vmatmul.mubr.f32.gmra.mrb[0].mxu0 %v239
      %v332 = vpop.f32.mrb[0].mxu0
      %v333 = vadd.f32 %v229, %v332
      %v334 = vpop.f32.mrb[0].mxu0
      %335 = vmatprep.mubr.f32.mxu0 0.0
      %336 = vmatmul.mubr.f32.gmra.mrb[0].mxu0 %v242
      %v337 = vpop.f32.mrb[0].mxu0
      %v338 = vadd.f32 %v230, %v337
      %v339 = vpop.f32.mrb[0].mxu0
      %340 = vmatprep.mubr.f32.mxu0 0.0
      %341 = vmatmul.mubr.f32.gmra.mrb[0].mxu0 %v245
      %v342 = vpop.f32.mrb[0].mxu0
      %v343 = vadd.f32 %v231, %v342
      %v344 = vpop.f32.mrb[0].mxu0
      %345 = vmatprep.mubr.f32.mxu0 0.0
      %346 = vmatmul.mubr.f32.gmra.mrb[0].mxu0 %v248
      %v347 = vpop.f32.mrb[0].mxu0
      %v348 = vadd.f32 %v232, %v347
      %v349 = vpop.f32.mrb[0].mxu0
      %350 = vmatprep.mubr.f32.mxu0 0.0
      %351 = vmatmul.mubr.f32.gmra.mrb[0].mxu0 %v251
      %v352 = vpop.f32.mrb[0].mxu0
      %v353 = vadd.f32 %v233, %v352
      %v354 = vpop.f32.mrb[0].mxu0
      %355 = vmatprep.mubr.f32.mxu0 0.0
      %356 = vmatmul.mubr.f32.gmra.mrb[0].mxu0 %v254
      %v357 = vpop.f32.mrb[0].mxu0
      %v358 = vadd.f32 %v234, %v357
      %v359 = vpop.f32.mrb[0].mxu0
      %360 = vmatprep.mubr.f32.mxu0 0.0
      %361 = vmatmul.mubr.f32.gmra.mrb[0].mxu0 %v257
      %v362 = vpop.f32.mrb[0].mxu0
      %v363 = vadd.f32 %v235, %v362
      %v364 = vpop.f32.mrb[0].mxu0
      %365 = vmatprep.mubr.f32.mxu0 0.0
      %366 = vmatmul.mubr.f32.gmra.mrb[0].mxu0 %v260
      %v367 = vpop.f32.mrb[0].mxu0
      %v368 = vadd.f32 %v236, %v367
      %v369 = vpop.f32.mrb[0].mxu0
      %370 = vdwg.mxu0
      %vm371 = vcmask 130048
      %372 = vst.msk [vmem:[%s218] sm:$0xff] %vm371, %v333
      %373 = vst.msk [vmem:[%s218 + $0x8] sm:$0xff] %vm371, %v338
      %374 = vst.msk [vmem:[%s218 + $0x10] sm:$0xff] %vm371, %v343
      %375 = vst.msk [vmem:[%s218 + $0x18] sm:$0xff] %vm371, %v348
      %376 = vst.msk [vmem:[%s218 + $0x20] sm:$0xff] %vm371, %v353
      %377 = vst.msk [vmem:[%s218 + $0x28] sm:$0xff] %vm371, %v358
      %378 = vst.msk [vmem:[%s218 + $0x30] sm:$0xff] %vm371, %v363
      %379 = vst.msk [vmem:[%s218 + $0x38] sm:$0xff] %vm371, %v368
      %p380 = scmp.lt.s32.totalorder %s19, 1
      %s381 = scalar_select %p380, %s19, 1
      %p382 = scmp.lt.s32.totalorder %s18, 0
      %s383 = scalar_select %p382, %s18, 0
      %s384 = smul.addr %s381, 8
      %s385 = sadd.s32 %s383, %s384
      %s386 = smul.addr %s385, 8
      %s387 = scalar_lea.vmem %s3, %s386
      // Predicated region
      $region33: #{tpu_custom_call.1} parent=31 // pred_check
        %p388 = pneg %p121
      $region34: #{tpu_custom_call.1} parent=31 // pred_check_branch
        %390 = sbr.rel (%p388) target = $region36
      $region35: #{tpu_custom_call.1} parent=31 // pred_region
        _
      $region36: #{tpu_custom_call.1} parent=31 // pred_fallthru
        _
    $region32: #{tpu_custom_call.1} parent=5 // pred_fallthru
      _
    %p391 = scmp.le.s32.totalorder 2, %s9
    // Predicated region
    $region37: #{tpu_custom_call.1} parent=5 // pred_check
      %p392 = pneg %p391
    $region38: #{tpu_custom_call.1} parent=5 // pred_check_branch
      %394 = sbr.rel (%p392) target = $region40
    $region39: #{tpu_custom_call.1} parent=5 // pred_region
      %s395 = ssub.s32 %s9, 2
      // Predicated region
      $region41: #{tpu_custom_call.1} parent=39 // pred_check
        %p396 = pneg %p127
      $region42: #{tpu_custom_call.1} parent=39 // pred_check_branch
        %398 = sbr.rel (%p396) target = $region44
      $region43: #{tpu_custom_call.1} parent=39 // pred_region
        %p399 = scmp.lt.s32.totalorder %s21, 1
        %s400 = scalar_select %p399, %s21, 1
        %p401 = scmp.lt.s32.totalorder %s20, 0
        %s402 = scalar_select %p401, %s20, 0
        %s403 = smul.addr %s400, 8
        %s404 = sadd.s32 %s402, %s403
        %s405 = smul.addr %s404, 8
        %s406 = scalar_lea.vmem %s3, %s405
      $region44: #{tpu_custom_call.1} parent=39 // pred_fallthru
        _
    $region40: #{tpu_custom_call.1} parent=5 // pred_fallthru
      _
  $region6: #{tpu_custom_call.1} parent=0 // loop_footer
    %s13 = sadd.s32 1, %s9
  $region7: #{tpu_custom_call.1} parent=0 // loop_footer_branch
    %8 = sbr.rel target = $region3
  $region8: #{tpu_custom_call.1} parent=0 // loop_exit
    _

</llo_original>
